<compile_context>
chip_gen: v7x
topology: tpu7x:2x2x1
jax: 0.10.0
libtpu: 0.0.40
codegen_flags: <defaults>
</compile_context>

<pallas_src>
import functools

import jax
import jax.numpy as jnp
from jax import lax
from jax.experimental import pallas as pl
from jax.experimental.pallas import tpu as pltpu

NEG_FILL = -9.0e15   # fill value used by the PyTorch module


def _round_up(v, m):
    return (v + m - 1) // m * m


def _pick_row_tile(n_pad):
    """Rows of the similarity matrix handled per grid step.

    Small graphs: a single tile (S1's column scale is fused in-kernel).
    Larger graphs: 128-512 rows so each (tile, n_pad) f32 working array stays
    around ~1 MiB and per-step VMEM is bounded independently of N.
    """
    if n_pad <= 512:
        return n_pad
    tr = max(128, min(512, ((1 << 20) // (4 * n_pad)) // 128 * 128))
    while n_pad % tr:          # n_pad is a multiple of 128 -> terminates at 128
        tr -= 128
    return tr


def _kth_largest_per_row(mat, k):
    """k-th largest value of each row (axis=1), shape (rows, 1).

    k-1 "knock out the current row max" passes, then a final row max.
    # TODO(synk): exact torch.topk tie semantics (keep exactly k entries when
    # the k-th value is duplicated) has no cheap Pallas equivalent; this
    # threshold form is value-identical for non-degenerate (random) inputs.
    """
    def knock(work):
        cur = jnp.max(work, axis=1, keepdims=True)
        return jnp.where(work < cur, work, -jnp.inf)

    if k <= 8:                       # small static k: unroll
        work = mat
        for _ in range(k - 1):
            work = knock(work)
    else:                            # large k: single live working buffer
        work = lax.fori_loop(0, k - 1, lambda _, w: knock(w), mat)
    return jnp.max(work, axis=1, keepdims=True)


def proj_norm_kernel(x_ref, y_ref, w_ref, xpn_ref, ypn_ref):
    """xpn = rownorm(X @ W), ypn = rownorm(Y @ W) for one row tile.

    The cosine denominator is folded in as a per-row rsqrt pre-normalization
    (EUP work), removing the NxN divide of the reference formulation.
    # TODO(synk): the reference divides by (||xp||*||yp|| + 1e-7); the additive
    # epsilon does not factorize per row, so zero-norm rows are guarded to 0
    # instead (identical for non-degenerate inputs).
    """
    w = w_ref[...]
    xp = jnp.dot(x_ref[...], w, preferred_element_type=jnp.float32)
    yp = jnp.dot(y_ref[...], w, preferred_element_type=jnp.float32)

    def rownorm(m):
        sq = jnp.sum(m * m, axis=1, keepdims=True)
        return m * jnp.where(sq > 0.0, lax.rsqrt(sq), 0.0)

    xpn_ref[...] = rownorm(xp)
    ypn_ref[...] = rownorm(yp)


def knn_att_main_kernel(xpn_ref, ypn_ref, s1_ref, d1_ref, s2_ref, *,
                        k, n_valid, row_tile, fuse_col_scale):
    n_pad = xpn_ref.shape[0]
    xpn_full = xpn_ref[...]
    ypn_full = ypn_ref[...]
    if row_tile == n_pad:
        xpn_t, ypn_t = xpn_full, ypn_full
    else:
        row0 = pl.multiple_of(pl.program_id(0) * row_tile, 128)
        xpn_t = xpn_ref[pl.ds(row0, row_tile), :]
        ypn_t = ypn_ref[pl.ds(row0, row_tile), :]

    # cos row-tile and cos^T row-tile, both as MXU A @ B^T matmuls
    # (no NxN transpose is ever materialized).
    nt = (((1,), (1,)), ((), ()))
    cos = lax.dot_general(xpn_t, ypn_full, nt, preferred_element_type=jnp.float32)
    cos_t = lax.dot_general(ypn_t, xpn_full, nt, preferred_element_type=jnp.float32)

    col_valid = None
    if n_pad != n_valid:
        # padded rows of xpn/ypn are exactly zero -> only columns need masking.
        col_valid = lax.broadcasted_iota(jnp.int32, (1, n_pad), 1) < n_valid
        cos = jnp.where(col_valid, cos, NEG_FILL)
        cos_t = jnp.where(col_valid, cos_t, NEG_FILL)

    # ---- S1 branch: top-k mask fused with relu, D^-1/2 S1 D^-1/2 -----------
    thr1 = _kth_largest_per_row(cos, k)
    s1 = jnp.where(cos >= thr1, jnp.maximum(cos, 0.0), 0.0)   # topk+scatter+relu
    rs1 = jnp.sum(s1, axis=1, keepdims=True)
    d1 = jnp.where(rs1 > 0.0, lax.rsqrt(rs1), 0.0)            # rowsum**-0.5, inf->0
    d1_row = jnp.transpose(d1)                                # (1, tile), lane-dense
    d1_ref[...] = d1_row
    if fuse_col_scale:
        # whole matrix in one tile: both scales are local -> finish S1 here.
        s1_ref[...] = (s1 * d1 * d1_row).astype(s1_ref.dtype)
    else:
        # row scale only; column scale (needs d1 of *all* rows) runs in the
        # tiny follow-up elementwise kernel.
        s1_ref[...] = (s1 * d1).astype(s1_ref.dtype)

    # ---- S2 branch: top-k mask of cos^T, row normalization D^-1 ------------
    thr2 = _kth_largest_per_row(cos_t, k)
    b = jnp.where(cos_t >= thr2, cos_t, NEG_FILL)
    if col_valid is not None:
        b = jnp.where(col_valid, b, 0.0)      # padded cols: exact 0 contribution
    rs2 = jnp.sum(b, axis=1, keepdims=True)
    d2 = jnp.where(rs2 != 0.0, 1.0 / rs2, 0.0)                # rowsum**-1, inf->0
    s2_ref[...] = (d2 * b).astype(s2_ref.dtype)


def col_scale_kernel(s1_ref, d1_ref, out_ref):
    # (tile, N) * (1, N) implicit broadcast -- finishes D^-1/2 S1 D^-1/2.
    out_ref[...] = s1_ref[...] * d1_ref[...]


def knn_att(x, y, w, k):
    """Forward pass of KNN_Att: returns (S1, S2), each (N, N) float32."""
    n, fin = x.shape
    assert y.shape == (n, fin), "module semantics require X.shape == Y.shape"
    assert w.shape[0] == fin
    fout = w.shape[1]
    assert 1 <= k <= n

    # lane-dense padding: every load / store is a full 128-lane vector.
    n_pad = _round_up(n, 128)
    fin_pad = _round_up(fin, 128)
    fout_pad = _round_up(fout, 128)

    xf = jnp.pad(x.astype(jnp.float32), ((0, n_pad - n), (0, fin_pad - fin)))
    yf = jnp.pad(y.astype(jnp.float32), ((0, n_pad - n), (0, fin_pad - fin)))
    wf = jnp.pad(w.astype(jnp.float32), ((0, fin_pad - fin), (0, fout_pad - fout)))

    tr = _pick_row_tile(n_pad)
    num_tiles = n_pad // tr
    fused = num_tiles == 1
    par = pltpu.CompilerParams(dimension_semantics=("parallel",))

    # --- 1) projection + per-row normalization ------------------------------
    xpn, ypn = pl.pallas_call(
        proj_norm_kernel,
        out_shape=(jax.ShapeDtypeStruct((n_pad, fout_pad), jnp.float32),
                   jax.ShapeDtypeStruct((n_pad, fout_pad), jnp.float32)),
        grid=(num_tiles,),
        in_specs=[
            pl.BlockSpec((tr, fin_pad), lambda i: (i, 0)),
            pl.BlockSpec((tr, fin_pad), lambda i: (i, 0)),
            pl.BlockSpec((fin_pad, fout_pad), lambda i: (0, 0)),
        ],
        out_specs=(
            pl.BlockSpec((tr, fout_pad), lambda i: (i, 0)),
            pl.BlockSpec((tr, fout_pad), lambda i: (i, 0)),
        ),
        compiler_params=par,
    )(xf, yf, wf)

    # --- 2) similarity tiles, top-k, normalizations --------------------------
    # rough per-step VMEM: resident xpn/ypn (double-buffered) + ~12 live
    # (tile, n_pad) f32 arrays (cos, cos^T, top-k work, S1, B, output buffers).
    vmem_est = 4 * (4 * n_pad * fout_pad + 12 * tr * n_pad)
    vmem_limit = int(min(64 << 20, max(32 << 20, vmem_est)))

    main = functools.partial(knn_att_main_kernel, k=k, n_valid=n,
                             row_tile=tr, fuse_col_scale=fused)
    s1p, d1_row, s2p = pl.pallas_call(
        main,
        out_shape=(jax.ShapeDtypeStruct((n_pad, n_pad), jnp.float32),
                   jax.ShapeDtypeStruct((1, n_pad), jnp.float32),
                   jax.ShapeDtypeStruct((n_pad, n_pad), jnp.float32)),
        grid=(num_tiles,),
        in_specs=[
            pl.BlockSpec((n_pad, fout_pad), lambda i: (0, 0)),   # xpn, resident
            pl.BlockSpec((n_pad, fout_pad), lambda i: (0, 0)),   # ypn, resident
        ],
        out_specs=(
            pl.BlockSpec((tr, n_pad), lambda i: (i, 0)),
            pl.BlockSpec((1, tr), lambda i: (0, i)),
            pl.BlockSpec((tr, n_pad), lambda i: (i, 0)),
        ),
        compiler_params=pltpu.CompilerParams(
            dimension_semantics=("parallel",),
            vmem_limit_bytes=vmem_limit,
        ),
        cost_estimate=pl.CostEstimate(
            flops=int(4 * n_pad * n_pad * fout_pad + (10 + 2 * k) * n_pad * n_pad),
            transcendentals=int(4 * n_pad),
            bytes_accessed=int(4 * (2 * n_pad * fout_pad + 2 * n_pad * n_pad)),
        ),
    )(xpn, ypn)

    # --- 3) S1 column scale (only when the matrix spans >1 row tile) --------
    if not fused:
        s1p = pl.pallas_call(
            col_scale_kernel,
            out_shape=jax.ShapeDtypeStruct((n_pad, n_pad), jnp.float32),
            grid=(num_tiles,),
            in_specs=[
                pl.BlockSpec((tr, n_pad), lambda i: (i, 0)),
                pl.BlockSpec((1, n_pad), lambda i: (0, 0)),
            ],
            out_specs=pl.BlockSpec((tr, n_pad), lambda i: (i, 0)),
            input_output_aliases={0: 0},        # scale S1 in place
            compiler_params=par,
        )(s1p, d1_row)

    if n_pad == n:        # avoid an extra NxN HBM round trip when aligned
        return s1p, s2p
    return s1p[:n, :n], s2p[:n, :n]


def ref_knn_att(x, y, w, k):
    """Pure-JAX reference mirroring the PyTorch forward (real top_k + scatter)."""
    hp = lax.Precision.HIGHEST
    xp = jnp.dot(x, w, precision=hp)
    yp = jnp.dot(y, w, precision=hp)
    n1 = jnp.linalg.norm(xp, axis=1, keepdims=True)
    n2 = jnp.linalg.norm(yp, axis=1, keepdims=True)
    cos = jnp.dot(xp, yp.T, precision=hp) / (n1 * n2.T + 1e-7)
    cos1 = cos.T

    def topk_scatter(m):
        vals, idx = lax.top_k(m, k)
        out = jnp.full_like(m, NEG_FILL)
        rows = jnp.arange(m.shape[0])[:, None]
        return out.at[rows, idx].set(vals)

    a = topk_scatter(cos)
    b = topk_scatter(cos1)

    s1 = jnp.maximum(a, 0.0)
    rs = jnp.sum(s1, axis=1)
    d = jnp.where(rs > 0.0, rs ** -0.5, 0.0)
    s1 = d[:, None] * s1 * d[None, :]

    rs = jnp.sum(b, axis=1)
    d = jnp.where(rs != 0.0, 1.0 / rs, 0.0)
    s2 = d[:, None] * b
    return s1, s2


if __name__ == "__main__":
    N, IN_FEAT, OUT_FEAT, K = 64, 32, 16, 4

    key = jax.random.PRNGKey(0)
    kx, ky, kw = jax.random.split(key, 3)
    x = jax.random.normal(kx, (N, IN_FEAT), jnp.float32)
    y = jax.random.normal(ky, (N, IN_FEAT), jnp.float32)
    # Xavier-uniform init of W, as in the module's __init__ (deterministic here).
    bound = (6.0 / (IN_FEAT + OUT_FEAT)) ** 0.5
    w = jax.random.uniform(kw, (IN_FEAT, OUT_FEAT), jnp.float32, -bound, bound)

    s1, s2 = knn_att(x, y, w, K)
    jax.block_until_ready((s1, s2))

    s1_ref, s2_ref = ref_knn_att(x, y, w, K)
    assert s1.shape == (N, N) and s2.shape == (N, N)
    assert jnp.allclose(s1, s1_ref, rtol=1e-3, atol=1e-5), "S1 mismatch"
    assert jnp.allclose(s2, s2_ref, rtol=1e-3, atol=1e-5), "S2 mismatch"

    print("KERNEL_OK")
</pallas_src>

<mosaic_0001>
module attributes {stable_mosaic.version = 11 : i64} {
  func.func @proj_norm_kernel(%arg0: i32, %arg1: memref<128x128xf32, #tpu.memory_space<vmem>>, %arg2: memref<128x128xf32, #tpu.memory_space<vmem>>, %arg3: memref<128x128xf32, #tpu.memory_space<vmem>>, %arg4: memref<128x128xf32, #tpu.memory_space<vmem>>, %arg5: memref<128x128xf32, #tpu.memory_space<vmem>>) attributes {dimension_semantics = [#tpu.dimension_semantics<parallel>], iteration_bounds = array<i64: 1>, scalar_prefetch = 0 : i64, scratch_operands = 0 : i64, tpu.core_type = #tpu.core_type<tc>, window_params = [{transform_indices = @transform_0, window_bounds = array<i64: 128, 128>}, {transform_indices = @transform_1, window_bounds = array<i64: 128, 128>}, {pipeline_mode = #tpu.pipeline_mode<synchronous>, transform_indices = @transform_2, window_bounds = array<i64: 128, 128>}, {transform_indices = @transform_3, window_bounds = array<i64: 128, 128>}, {transform_indices = @transform_4, window_bounds = array<i64: 128, 128>}]} {
    %c0 = arith.constant 0 : index
    %c0_0 = arith.constant 0 : index
    %0 = vector.load %arg3[%c0, %c0_0] : memref<128x128xf32, #tpu.memory_space<vmem>>, vector<128x128xf32>
    %c0_1 = arith.constant 0 : index
    %c0_2 = arith.constant 0 : index
    %1 = vector.load %arg1[%c0_1, %c0_2] : memref<128x128xf32, #tpu.memory_space<vmem>>, vector<128x128xf32>
    %cst = arith.constant dense<0.000000e+00> : vector<128x128xf32>
    %2 = tpu.matmul %1, %0, %cst {dimension_numbers = #tpu.dot_dimension_numbers<[1], [0], [0], [1], [0, 0, 1, 1], [], []>} : vector<128x128xf32>, vector<128x128xf32>, vector<128x128xf32> -> vector<128x128xf32>
    %c0_3 = arith.constant 0 : index
    %c0_4 = arith.constant 0 : index
    %3 = vector.load %arg2[%c0_3, %c0_4] : memref<128x128xf32, #tpu.memory_space<vmem>>, vector<128x128xf32>
    %cst_5 = arith.constant dense<0.000000e+00> : vector<128x128xf32>
    %4 = tpu.matmul %3, %0, %cst_5 {dimension_numbers = #tpu.dot_dimension_numbers<[1], [0], [0], [1], [0, 0, 1, 1], [], []>} : vector<128x128xf32>, vector<128x128xf32>, vector<128x128xf32> -> vector<128x128xf32>
    %5 = arith.mulf %2, %2 : vector<128x128xf32>
    %cst_6 = arith.constant dense<0.000000e+00> : vector<128xf32>
    %6 = vector.multi_reduction <add>, %5, %cst_6 [1] : vector<128x128xf32> to vector<128xf32>
    %7 = vector.shape_cast %6 : vector<128xf32> to vector<128x1xf32>
    %cst_7 = arith.constant 0.000000e+00 : f32
    %8 = vector.broadcast %cst_7 : f32 to vector<128x1xf32>
    %9 = arith.cmpf ogt, %7, %8 : vector<128x1xf32>
    %10 = math.rsqrt %7 : vector<128x1xf32>
    %cst_8 = arith.constant 0.000000e+00 : f32
    %11 = vector.broadcast %cst_8 : f32 to vector<128x1xf32>
    %12 = arith.select %9, %10, %11 : vector<128x1xi1>, vector<128x1xf32>
    %13 = vector.broadcast %12 : vector<128x1xf32> to vector<128x128xf32>
    %14 = arith.mulf %2, %13 : vector<128x128xf32>
    %c0_9 = arith.constant 0 : index
    %c0_10 = arith.constant 0 : index
    %15 = vector.load %arg4[%c0_9, %c0_10] : memref<128x128xf32, #tpu.memory_space<vmem>>, vector<128x128xf32>
    tpu.vector_store %arg4[%c0_9, %c0_10], %14 {strides = array<i32>} : memref<128x128xf32, #tpu.memory_space<vmem>>, vector<128x128xf32>,
    %16 = arith.mulf %4, %4 : vector<128x128xf32>
    %cst_11 = arith.constant dense<0.000000e+00> : vector<128xf32>
    %17 = vector.multi_reduction <add>, %16, %cst_11 [1] : vector<128x128xf32> to vector<128xf32>
    %18 = vector.shape_cast %17 : vector<128xf32> to vector<128x1xf32>
    %cst_12 = arith.constant 0.000000e+00 : f32
    %19 = vector.broadcast %cst_12 : f32 to vector<128x1xf32>
    %20 = arith.cmpf ogt, %18, %19 : vector<128x1xf32>
    %21 = math.rsqrt %18 : vector<128x1xf32>
    %cst_13 = arith.constant 0.000000e+00 : f32
    %22 = vector.broadcast %cst_13 : f32 to vector<128x1xf32>
    %23 = arith.select %20, %21, %22 : vector<128x1xi1>, vector<128x1xf32>
    %24 = vector.broadcast %23 : vector<128x1xf32> to vector<128x128xf32>
    %25 = arith.mulf %4, %24 : vector<128x128xf32>
    %c0_14 = arith.constant 0 : index
    %c0_15 = arith.constant 0 : index
    %26 = vector.load %arg5[%c0_14, %c0_15] : memref<128x128xf32, #tpu.memory_space<vmem>>, vector<128x128xf32>
    tpu.vector_store %arg5[%c0_14, %c0_15], %25 {strides = array<i32>} : memref<128x128xf32, #tpu.memory_space<vmem>>, vector<128x128xf32>,
    return
  }
  func.func @transform_0(%arg0: i32) -> (i32, i32) {
    %c0_i32 = arith.constant 0 : i32
    %c0_i32_0 = arith.constant 0 : i32
    return %arg0, %c0_i32 : i32, i32
  }
  func.func @transform_1(%arg0: i32) -> (i32, i32) {
    %c0_i32 = arith.constant 0 : i32
    %c0_i32_0 = arith.constant 0 : i32
    return %arg0, %c0_i32 : i32, i32
  }
  func.func @transform_2(%arg0: i32) -> (i32, i32) {
    %c0_i32 = arith.constant 0 : i32
    %c0_i32_0 = arith.constant 0 : i32
    %c0_i32_1 = arith.constant 0 : i32
    return %c0_i32, %c0_i32_0 : i32, i32
  }
  func.func @transform_3(%arg0: i32) -> (i32, i32) {
    %c0_i32 = arith.constant 0 : i32
    %c0_i32_0 = arith.constant 0 : i32
    return %arg0, %c0_i32 : i32, i32
  }
  func.func @transform_4(%arg0: i32) -> (i32, i32) {
    %c0_i32 = arith.constant 0 : i32
    %c0_i32_0 = arith.constant 0 : i32
    return %arg0, %c0_i32 : i32, i32
  }
}

</mosaic_0001>

<llo_original>
// kernel: tpu_custom_call.1
$region0: #{tpu_custom_call.1}
  #allocation0 [shape = 'u32[]', space=smem, size = 0x4, offset = 0x4, fixed_abs, tag = 'smem constant byte address 0x4 - core index']
  #allocation1 [shape = 'u32[144,128]{1,0:T(1,128)}', space=vmem, size = 0x12000, scoped, tag = 'internal scratch']
  %s0 = inlined_call_operand.hbm [shape: f32[128,128], index: 0, kind: input, shape index: {}]
  %s1 = inlined_call_operand.hbm [shape: f32[128,128], index: 1, kind: input, shape index: {}]
  %s2 = inlined_call_operand.hbm [shape: f32[128,128], index: 2, kind: input, shape index: {}]
  %s3 = inlined_call_operand.hbm [shape: f32[128,128], index: 3, kind: output, shape index: {0}]
  %s4 = inlined_call_operand.hbm [shape: f32[128,128], index: 4, kind: output, shape index: {1}]
  %5 = xla_tuple %s3, %s4
  %s6 = sld [smem:[#allocation0]]
  $region42: #{tpu_custom_call.1} parent=0
    _
  %s8 = ssub.s32 1, %s6
  %s9 = scalar_select 0, %s8, %s6
  $region1: #{tpu_custom_call.1} parent=0
    #allocation2 [shape = 'u8[65536]{0}', space=vmem, size = 0x10000, scoped, tag = 'input window, operand 0, single buffered']
    #allocation3 [shape = 's32[1]{0}', space=sflag, size = 0x4, scoped, tag = 'scoped memory for tpu_custom_call.1']
    #allocation4 [shape = 's32[1]{0}', space=sflag, size = 0x4, scoped, tag = 'scoped memory for tpu_custom_call.1']
    #allocation5 [shape = 'u8[65536]{0}', space=vmem, size = 0x10000, scoped, tag = 'input window, operand 1, single buffered']
    #allocation6 [shape = 's32[1]{0}', space=sflag, size = 0x4, scoped, tag = 'scoped memory for tpu_custom_call.1']
    #allocation7 [shape = 'u8[65536]{0}', space=vmem, size = 0x10000, scoped, tag = 'input window, operand 2, single buffered']
    #allocation8 [shape = 'u8[65536]{0}', space=vmem, size = 0x10000, scoped, tag = 'output window, operand 0, single buffered']
    #allocation9 [shape = 'u8[65536]{0}', space=vmem, size = 0x10000, scoped, tag = 'output window, operand 1, single buffered']
    #allocation10 [shape = 's32[1]{0}', space=sflag, size = 0x4, scoped, tag = 'scoped memory for tpu_custom_call.1']
    %10 = vsyncpa [#allocation3], 0
    %11 = vsyncpa [#allocation6], 0
    %12 = vsyncpa [#allocation4], 0
    %13 = vsyncpa [#allocation10], 0
    // Predicated region
    $region2: #{tpu_custom_call.1} parent=1 // pred_check
      _
    $region3: #{tpu_custom_call.1} parent=1 // pred_check_branch
      %15 = sbr.rel (0) target = $region5
    $region4: #{tpu_custom_call.1} parent=1 // pred_region
      %s17 = ssub.s32 2048, 2048
      %18 = vsyncadd [#allocation3], %s17
      %s19 = sshll.u32 [#allocation2], 4
      %s20 = int_to_ptr.vmem [resolvable:$true] %s19
      %25 = dma.hbm_to_vmem [thread:$0]  %s0, 2048, %s20, [#allocation3], 128, 128, 8
    $region5: #{tpu_custom_call.1} parent=1 // pred_fallthru
      _
    // Predicated region
    $region6: #{tpu_custom_call.1} parent=1 // pred_check
      _
    $region7: #{tpu_custom_call.1} parent=1 // pred_check_branch
      %27 = sbr.rel (0) target = $region9
    $region8: #{tpu_custom_call.1} parent=1 // pred_region
      %s29 = ssub.s32 2048, 2048
      %30 = vsyncadd [#allocation6], %s29
      %s31 = sshll.u32 [#allocation5], 4
      %s32 = int_to_ptr.vmem [resolvable:$true] %s31
      %37 = dma.hbm_to_vmem [thread:$0]  %s1, 2048, %s32, [#allocation6], 128, 128, 8
    $region9: #{tpu_custom_call.1} parent=1 // pred_fallthru
      _
    // Predicated region
    $region10: #{tpu_custom_call.1} parent=1 // pred_check
      _
    $region11: #{tpu_custom_call.1} parent=1 // pred_check_branch
      %39 = sbr.rel (0) target = $region13
    $region12: #{tpu_custom_call.1} parent=1 // pred_region
      %s41 = ssub.s32 2048, 2048
      %42 = vsyncadd [#allocation6], %s41
      %s43 = sshll.u32 [#allocation7], 4
      %s44 = int_to_ptr.vmem [resolvable:$true] %s43
      %49 = dma.hbm_to_vmem [thread:$0]  %s2, 2048, %s44, [#allocation6], 128, 128, 8
    $region13: #{tpu_custom_call.1} parent=1 // pred_fallthru
      _
    // Predicated region
    $region14: #{tpu_custom_call.1} parent=1 // pred_check
      _
    $region15: #{tpu_custom_call.1} parent=1 // pred_check_branch
      %51 = sbr.rel (0) target = $region17
    $region16: #{tpu_custom_call.1} parent=1 // pred_region
      %52 = dma.done [#allocation3], 2048
    $region17: #{tpu_custom_call.1} parent=1 // pred_fallthru
      _
    // Predicated region
    $region18: #{tpu_custom_call.1} parent=1 // pred_check
      _
    $region19: #{tpu_custom_call.1} parent=1 // pred_check_branch
      %54 = sbr.rel (0) target = $region21
    $region20: #{tpu_custom_call.1} parent=1 // pred_region
      %55 = dma.done [#allocation6], 2048
    $region21: #{tpu_custom_call.1} parent=1 // pred_fallthru
      _
    // Predicated region
    $region22: #{tpu_custom_call.1} parent=1 // pred_check
      _
    $region23: #{tpu_custom_call.1} parent=1 // pred_check_branch
      %57 = sbr.rel (0) target = $region25
    $region24: #{tpu_custom_call.1} parent=1 // pred_region
      %58 = dma.done [#allocation6], 2048
    $region25: #{tpu_custom_call.1} parent=1 // pred_fallthru
      _
    %v59 = vld [vmem:[#allocation7] sm:$0xff]
    %v60 = vld [vmem:[#allocation7 + $0x8] sm:$0xff]
    %v61 = vld [vmem:[#allocation7 + $0x10] sm:$0xff]
    %v62 = vld [vmem:[#allocation7 + $0x18] sm:$0xff]
    %v63 = vld [vmem:[#allocation7 + $0x20] sm:$0xff]
    %v64 = vld [vmem:[#allocation7 + $0x28] sm:$0xff]
    %v65 = vld [vmem:[#allocation7 + $0x30] sm:$0xff]
    %v66 = vld [vmem:[#allocation7 + $0x38] sm:$0xff]
    %v67 = vld [vmem:[#allocation7 + $0x40] sm:$0xff]
    %v68 = vld [vmem:[#allocation7 + $0x48] sm:$0xff]
    %v69 = vld [vmem:[#allocation7 + $0x50] sm:$0xff]
    %v70 = vld [vmem:[#allocation7 + $0x58] sm:$0xff]
    %v71 = vld [vmem:[#allocation7 + $0x60] sm:$0xff]
    %v72 = vld [vmem:[#allocation7 + $0x68] sm:$0xff]
    %v73 = vld [vmem:[#allocation7 + $0x70] sm:$0xff]
    %v74 = vld [vmem:[#allocation7 + $0x78] sm:$0xff]
    %v75 = vld [vmem:[#allocation2] sm:$0xff]
    %v76 = vld [vmem:[#allocation2 + $0x8] sm:$0xff]
    %v77 = vld [vmem:[#allocation2 + $0x10] sm:$0xff]
    %v78 = vld [vmem:[#allocation2 + $0x18] sm:$0xff]
    %v79 = vld [vmem:[#allocation2 + $0x20] sm:$0xff]
    %v80 = vld [vmem:[#allocation2 + $0x28] sm:$0xff]
    %v81 = vld [vmem:[#allocation2 + $0x30] sm:$0xff]
    %v82 = vld [vmem:[#allocation2 + $0x38] sm:$0xff]
    %v83 = vld [vmem:[#allocation2 + $0x40] sm:$0xff]
    %v84 = vld [vmem:[#allocation2 + $0x48] sm:$0xff]
    %v85 = vld [vmem:[#allocation2 + $0x50] sm:$0xff]
    %v86 = vld [vmem:[#allocation2 + $0x58] sm:$0xff]
    %v87 = vld [vmem:[#allocation2 + $0x60] sm:$0xff]
    %v88 = vld [vmem:[#allocation2 + $0x68] sm:$0xff]
    %v89 = vld [vmem:[#allocation2 + $0x70] sm:$0xff]
    %v90 = vld [vmem:[#allocation2 + $0x78] sm:$0xff]
    %91 = vmatprep.subr.mxu0 0.0
    %92 = vmatpush1.msra.mxu0 %v59
    %93 = vmatprep.subr.mxu0 0.0
    %94 = vmatpush1.msra.mxu0 %v60
    %95 = vmatprep.subr.mxu0 0.0
    %96 = vmatpush1.msra.mxu0 %v61
    %97 = vmatprep.subr.mxu0 0.0
    %98 = vmatpush1.msra.mxu0 %v62
    %99 = vmatprep.subr.mxu0 0.0
    %100 = vmatpush1.msra.mxu0 %v63
    %101 = vmatprep.subr.mxu0 0.0
    %102 = vmatpush1.msra.mxu0 %v64
    %103 = vmatprep.subr.mxu0 0.0
    %104 = vmatpush1.msra.mxu0 %v65
    %105 = vmatprep.subr.mxu0 0.0
    %106 = vmatpush1.msra.mxu0 %v66
    %107 = vmatprep.subr.mxu0 0.0
    %108 = vmatpush1.msra.mxu0 %v67
    %109 = vmatprep.subr.mxu0 0.0
    %110 = vmatpush1.msra.mxu0 %v68
    %111 = vmatprep.subr.mxu0 0.0
    %112 = vmatpush1.msra.mxu0 %v69
    %113 = vmatprep.subr.mxu0 0.0
    %114 = vmatpush1.msra.mxu0 %v70
    %115 = vmatprep.subr.mxu0 0.0
    %116 = vmatpush1.msra.mxu0 %v71
    %117 = vmatprep.subr.mxu0 0.0
    %118 = vmatpush1.msra.mxu0 %v72
    %119 = vmatprep.subr.mxu0 0.0
    %120 = vmatpush1.msra.mxu0 %v73
    %121 = vmatprep.subr.mxu0 0.0
    %122 = vmatpush1.msra.mxu0 %v74
    %123 = vmatprep.subr.mxu0 0.0
    %124 = vmatpush1.msra.mxu0 0.0
    %125 = vmatprep.subr.mxu0 0.0
    %126 = vmatpush1.msra.mxu0 0.0
    %127 = vmatprep.subr.mxu0 0.0
    %128 = vmatpush1.msra.mxu0 0.0
    %129 = vmatprep.subr.mxu0 0.0
    %130 = vmatpush1.msra.mxu0 0.0
    %131 = vmatprep.subr.mxu0 0.0
    %132 = vmatpush1.msra.mxu0 0.0
    %133 = vmatprep.subr.mxu0 0.0
    %134 = vmatpush1.msra.mxu0 0.0
    %135 = vmatprep.subr.mxu0 0.0
    %136 = vmatpush1.msra.mxu0 0.0
    %137 = vmatprep.subr.mxu0 0.0
    %138 = vmatpush1.msra.mxu0 0.0
    %139 = vmatprep.subr.mxu0 0.0
    %140 = vmatpush1.msra.mxu0 0.0
    %141 = vmatprep.subr.mxu0 0.0
    %142 = vmatpush1.msra.mxu0 0.0
    %143 = vmatprep.subr.mxu0 0.0
    %144 = vmatpush1.msra.mxu0 0.0
    %145 = vmatprep.subr.mxu0 0.0
    %146 = vmatpush1.msra.mxu0 0.0
    %147 = vmatprep.subr.mxu0 0.0
    %148 = vmatpush1.msra.mxu0 0.0
    %149 = vmatprep.subr.mxu0 0.0
    %150 = vmatpush1.msra.mxu0 0.0
    %151 = vmatprep.subr.mxu0 0.0
    %152 = vmatpush1.msra.mxu0 0.0
    %153 = vmatprep.subr.mxu0 0.0
    %154 = vmatpush1.msra.mxu0 0.0
    %155 = vmatprep.mubr.f32.mxu0 0.0
    %156 = vmatmul.mubr.f32.gmra.mrb[0].mxu0 %v75
    %v157 = vpop.f32.mrb[0].mxu0
    %v158 = vadd.f32 0.0, %v157
    %v159 = vpop.f32.mrb[0].mxu0
    %160 = vmatprep.mubr.f32.mxu0 0.0
    %161 = vmatmul.mubr.f32.gmra.mrb[0].mxu0 %v76
    %v162 = vpop.f32.mrb[0].mxu0
    %v163 = vadd.f32 0.0, %v162
    %v164 = vpop.f32.mrb[0].mxu0
    %165 = vmatprep.mubr.f32.mxu0 0.0
    %166 = vmatmul.mubr.f32.gmra.mrb[0].mxu0 %v77
    %v167 = vpop.f32.mrb[0].mxu0
    %v168 = vadd.f32 0.0, %v167
    %v169 = vpop.f32.mrb[0].mxu0
    %170 = vmatprep.mubr.f32.mxu0 0.0
    %171 = vmatmul.mubr.f32.gmra.mrb[0].mxu0 %v78
    %v172 = vpop.f32.mrb[0].mxu0
    %v173 = vadd.f32 0.0, %v172
    %v174 = vpop.f32.mrb[0].mxu0
    %175 = vmatprep.mubr.f32.mxu0 0.0
    %176 = vmatmul.mubr.f32.gmra.mrb[0].mxu0 %v79
    %v177 = vpop.f32.mrb[0].mxu0
    %v178 = vadd.f32 0.0, %v177
    %v179 = vpop.f32.mrb[0].mxu0
    %180 = vmatprep.mubr.f32.mxu0 0.0
    %181 = vmatmul.mubr.f32.gmra.mrb[0].mxu0 %v80
    %v182 = vpop.f32.mrb[0].mxu0
    %v183 = vadd.f32 0.0, %v182
    %v184 = vpop.f32.mrb[0].mxu0
    %185 = vmatprep.mubr.f32.mxu0 0.0
    %186 = vmatmul.mubr.f32.gmra.mrb[0].mxu0 %v81
    %v187 = vpop.f32.mrb[0].mxu0
    %v188 = vadd.f32 0.0, %v187
    %v189 = vpop.f32.mrb[0].mxu0
    %190 = vmatprep.mubr.f32.mxu0 0.0
    %191 = vmatmul.mubr.f32.gmra.mrb[0].mxu0 %v82
    %v192 = vpop.f32.mrb[0].mxu0
    %v193 = vadd.f32 0.0, %v192
    %v194 = vpop.f32.mrb[0].mxu0
    %195 = vmatprep.mubr.f32.mxu0 0.0
    %196 = vmatmul.mubr.f32.gmra.mrb[0].mxu0 %v83
    %v197 = vpop.f32.mrb[0].mxu0
    %v198 = vadd.f32 0.0, %v197
    %v199 = vpop.f32.mrb[0].mxu0
    %200 = vmatprep.mubr.f32.mxu0 0.0
    %201 = vmatmul.mubr.f32.gmra.mrb[0].mxu0 %v84
    %v202 = vpop.f32.mrb[0].mxu0
    %v203 = vadd.f32 0.0, %v202
    %v204 = vpop.f32.mrb[0].mxu0
    %205 = vmatprep.mubr.f32.mxu0 0.0
    %206 = vmatmul.mubr.f32.gmra.mrb[0].mxu0 %v85
    %v207 = vpop.f32.mrb[0].mxu0
    %v208 = vadd.f32 0.0, %v207
    %v209 = vpop.f32.mrb[0].mxu0
    %210 = vmatprep.mubr.f32.mxu0 0.0
    %211 = vmatmul.mubr.f32.gmra.mrb[0].mxu0 %v86
    %v212 = vpop.f32.mrb[0].mxu0
    %v213 = vadd.f32 0.0, %v212
    %v214 = vpop.f32.mrb[0].mxu0
    %215 = vmatprep.mubr.f32.mxu0 0.0
    %216 = vmatmul.mubr.f32.gmra.mrb[0].mxu0 %v87
    %v217 = vpop.f32.mrb[0].mxu0
    %v218 = vadd.f32 0.0, %v217
    %v219 = vpop.f32.mrb[0].mxu0
    %220 = vmatprep.mubr.f32.mxu0 0.0
    %221 = vmatmul.mubr.f32.gmra.mrb[0].mxu0 %v88
    %v222 = vpop.f32.mrb[0].mxu0
    %v223 = vadd.f32 0.0, %v222
    %v224 = vpop.f32.mrb[0].mxu0
    %225 = vmatprep.mubr.f32.mxu0 0.0
    %226 = vmatmul.mubr.f32.gmra.mrb[0].mxu0 %v89
    %v227 = vpop.f32.mrb[0].mxu0
    %v228 = vadd.f32 0.0, %v227
    %v229 = vpop.f32.mrb[0].mxu0
    %230 = vmatprep.mubr.f32.mxu0 0.0
    %231 = vmatmul.mubr.f32.gmra.mrb[0].mxu0 %v90
    %v232 = vpop.f32.mrb[0].mxu0
    %v233 = vadd.f32 0.0, %v232
    %v234 = vpop.f32.mrb[0].mxu0
    %235 = vdwg.mxu0
    %v236 = vld [vmem:[#allocation5] sm:$0xff]
    %v237 = vld [vmem:[#allocation5 + $0x8] sm:$0xff]
    %v238 = vld [vmem:[#allocation5 + $0x10] sm:$0xff]
    %v239 = vld [vmem:[#allocation5 + $0x18] sm:$0xff]
    %v240 = vld [vmem:[#allocation5 + $0x20] sm:$0xff]
    %v241 = vld [vmem:[#allocation5 + $0x28] sm:$0xff]
    %v242 = vld [vmem:[#allocation5 + $0x30] sm:$0xff]
    %v243 = vld [vmem:[#allocation5 + $0x38] sm:$0xff]
    %v244 = vld [vmem:[#allocation5 + $0x40] sm:$0xff]
    %v245 = vld [vmem:[#allocation5 + $0x48] sm:$0xff]
    %v246 = vld [vmem:[#allocation5 + $0x50] sm:$0xff]
    %v247 = vld [vmem:[#allocation5 + $0x58] sm:$0xff]
    %v248 = vld [vmem:[#allocation5 + $0x60] sm:$0xff]
    %v249 = vld [vmem:[#allocation5 + $0x68] sm:$0xff]
    %v250 = vld [vmem:[#allocation5 + $0x70] sm:$0xff]
    %v251 = vld [vmem:[#allocation5 + $0x78] sm:$0xff]
    %252 = vmatprep.subr.mxu0 0.0
    %253 = vmatpush1.msra.mxu0 %v59
    %254 = vmatprep.subr.mxu0 0.0
    %255 = vmatpush1.msra.mxu0 %v60
    %256 = vmatprep.subr.mxu0 0.0
    %257 = vmatpush1.msra.mxu0 %v61
    %258 = vmatprep.subr.mxu0 0.0
    %259 = vmatpush1.msra.mxu0 %v62
    %260 = vmatprep.subr.mxu0 0.0
    %261 = vmatpush1.msra.mxu0 %v63
    %262 = vmatprep.subr.mxu0 0.0
    %263 = vmatpush1.msra.mxu0 %v64
    %264 = vmatprep.subr.mxu0 0.0
    %265 = vmatpush1.msra.mxu0 %v65
    %266 = vmatprep.subr.mxu0 0.0
    %267 = vmatpush1.msra.mxu0 %v66
    %268 = vmatprep.subr.mxu0 0.0
    %269 = vmatpush1.msra.mxu0 %v67
    %270 = vmatprep.subr.mxu0 0.0
    %271 = vmatpush1.msra.mxu0 %v68
    %272 = vmatprep.subr.mxu0 0.0
    %273 = vmatpush1.msra.mxu0 %v69
    %274 = vmatprep.subr.mxu0 0.0
    %275 = vmatpush1.msra.mxu0 %v70
    %276 = vmatprep.subr.mxu0 0.0
    %277 = vmatpush1.msra.mxu0 %v71
    %278 = vmatprep.subr.mxu0 0.0
    %279 = vmatpush1.msra.mxu0 %v72
    %280 = vmatprep.subr.mxu0 0.0
    %281 = vmatpush1.msra.mxu0 %v73
    %282 = vmatprep.subr.mxu0 0.0
    %283 = vmatpush1.msra.mxu0 %v74
    %284 = vmatprep.subr.mxu0 0.0
    %285 = vmatpush1.msra.mxu0 0.0
    %286 = vmatprep.subr.mxu0 0.0
    %287 = vmatpush1.msra.mxu0 0.0
    %288 = vmatprep.subr.mxu0 0.0
    %289 = vmatpush1.msra.mxu0 0.0
    %290 = vmatprep.subr.mxu0 0.0
    %291 = vmatpush1.msra.mxu0 0.0
    %292 = vmatprep.subr.mxu0 0.0
    %293 = vmatpush1.msra.mxu0 0.0
    %294 = vmatprep.subr.mxu0 0.0
    %295 = vmatpush1.msra.mxu0 0.0
    %296 = vmatprep.subr.mxu0 0.0
    %297 = vmatpush1.msra.mxu0 0.0
    %298 = vmatprep.subr.mxu0 0.0
    %299 = vmatpush1.msra.mxu0 0.0
    %300 = vmatprep.subr.mxu0 0.0
    %301 = vmatpush1.msra.mxu0 0.0
    %302 = vmatprep.subr.mxu0 0.0
    %303 = vmatpush1.msra.mxu0 0.0
    %304 = vmatprep.subr.mxu0 0.0
    %305 = vmatpush1.msra.mxu0 0.0
    %306 = vmatprep.subr.mxu0 0.0
    %307 = vmatpush1.msra.mxu0 0.0
    %308 = vmatprep.subr.mxu0 0.0
    %309 = vmatpush1.msra.mxu0 0.0
    %310 = vmatprep.subr.mxu0 0.0
    %311 = vmatpush1.msra.mxu0 0.0
    %312 = vmatprep.subr.mxu0 0.0
    %313 = vmatpush1.msra.mxu0 0.0
    %314 = vmatprep.subr.mxu0 0.0
    %315 = vmatpush1.msra.mxu0 0.0
    %316 = vmatprep.mubr.f32.mxu0 0.0
    %317 = vmatmul.mubr.f32.gmra.mrb[0].mxu0 %v236
    %v318 = vpop.f32.mrb[0].mxu0
    %v319 = vadd.f32 0.0, %v318
    %v320 = vpop.f32.mrb[0].mxu0
    %321 = vmatprep.mubr.f32.mxu0 0.0
    %322 = vmatmul.mubr.f32.gmra.mrb[0].mxu0 %v237
    %v323 = vpop.f32.mrb[0].mxu0
    %v324 = vadd.f32 0.0, %v323
    %v325 = vpop.f32.mrb[0].mxu0
    %326 = vmatprep.mubr.f32.mxu0 0.0
    %327 = vmatmul.mubr.f32.gmra.mrb[0].mxu0 %v238
    %v328 = vpop.f32.mrb[0].mxu0
    %v329 = vadd.f32 0.0, %v328
    %v330 = vpop.f32.mrb[0].mxu0
    %331 = vmatprep.mubr.f32.mxu0 0.0
    %332 = vmatmul.mubr.f32.gmra.mrb[0].mxu0 %v239
    %v333 = vpop.f32.mrb[0].mxu0
    %v334 = vadd.f32 0.0, %v333
    %v335 = vpop.f32.mrb[0].mxu0
    %336 = vmatprep.mubr.f32.mxu0 0.0
    %337 = vmatmul.mubr.f32.gmra.mrb[0].mxu0 %v240
    %v338 = vpop.f32.mrb[0].mxu0
    %v339 = vadd.f32 0.0, %v338
    %v340 = vpop.f32.mrb[0].mxu0
    %341 = vmatprep.mubr.f32.mxu0 0.0
    %342 = vmatmul.mubr.f32.gmra.mrb[0].mxu0 %v241
    %v343 = vpop.f32.mrb[0].mxu0
    %v344 = vadd.f32 0.0, %v343
    %v345 = vpop.f32.mrb[0].mxu0
    %346 = vmatprep.mubr.f32.mxu0 0.0
    %347 = vmatmul.mubr.f32.gmra.mrb[0].mxu0 %v242
    %v348 = vpop.f32.mrb[0].mxu0
    %v349 = vadd.f32 0.0, %v348
    %v350 = vpop.f32.mrb[0].mxu0
    %351 = vmatprep.mubr.f32.mxu0 0.0
    %352 = vmatmul.mubr.f32.gmra.mrb[0].mxu0 %v243
    %v353 = vpop.f32.mrb[0].mxu0
    %v354 = vadd.f32 0.0, %v353
    %v355 = vpop.f32.mrb[0].mxu0
    %356 = vmatprep.mubr.f32.mxu0 0.0
    %357 = vmatmul.mubr.f32.gmra.mrb[0].mxu0 %v244
    %v358 = vpop.f32.mrb[0].mxu0
    %v359 = vadd.f32 0.0, %v358
    %v360 = vpop.f32.mrb[0].mxu0
    %361 = vmatprep.mubr.f32.mxu0 0.0
    %362 = vmatmul.mubr.f32.gmra.mrb[0].mxu0 %v245
    %v363 = vpop.f32.mrb[0].mxu0
    %v364 = vadd.f32 0.0, %v363
    %v365 = vpop.f32.mrb[0].mxu0
    %366 = vmatprep.mubr.f32.mxu0 0.0
    %367 = vmatmul.mubr.f32.gmra.mrb[0].mxu0 %v246
    %v368 = vpop.f32.mrb[0].mxu0
    %v369 = vadd.f32 0.0, %v368
    %v370 = vpop.f32.mrb[0].mxu0
    %371 = vmatprep.mubr.f32.mxu0 0.0
    %372 = vmatmul.mubr.f32.gmra.mrb[0].mxu0 %v247
    %v373 = vpop.f32.mrb[0].mxu0
    %v374 = vadd.f32 0.0, %v373
    %v375 = vpop.f32.mrb[0].mxu0
    %376 = vmatprep.mubr.f32.mxu0 0.0
    %377 = vmatmul.mubr.f32.gmra.mrb[0].mxu0 %v248
    %v378 = vpop.f32.mrb[0].mxu0
    %v379 = vadd.f32 0.0, %v378
    %v380 = vpop.f32.mrb[0].mxu0
    %381 = vmatprep.mubr.f32.mxu0 0.0
    %382 = vmatmul.mubr.f32.gmra.mrb[0].mxu0 %v249
    %v383 = vpop.f32.mrb[0].mxu0
    %v384 = vadd.f32 0.0, %v383
    %v385 = vpop.f32.mrb[0].mxu0
    %386 = vmatprep.mubr.f32.mxu0 0.0
    %387 = vmatmul.mubr.f32.gmra.mrb[0].mxu0 %v250
    %v388 = vpop.f32.mrb[0].mxu0
    %v389 = vadd.f32 0.0, %v388
    %v390 = vpop.f32.mrb[0].mxu0
    %391 = vmatprep.mubr.f32.mxu0 0.0
    %392 = vmatmul.mubr.f32.gmra.mrb[0].mxu0 %v251
    %v393 = vpop.f32.mrb[0].mxu0
    %v394 = vadd.f32 0.0, %v393
    %v395 = vpop.f32.mrb[0].mxu0
    %396 = vdwg.mxu0
    %v397 = vmul.f32 %v158, %v158
    %v398 = vmul.f32 %v163, %v163
    %v399 = vmul.f32 %v168, %v168
    %v400 = vmul.f32 %v173, %v173
    %v401 = vmul.f32 %v178, %v178
    %v402 = vmul.f32 %v183, %v183
    %v403 = vmul.f32 %v188, %v188
    %v404 = vmul.f32 %v193, %v193
    %v405 = vmul.f32 %v198, %v198
    %v406 = vmul.f32 %v203, %v203
    %v407 = vmul.f32 %v208, %v208
    %v408 = vmul.f32 %v213, %v213
    %v409 = vmul.f32 %v218, %v218
    %v410 = vmul.f32 %v223, %v223
    %v411 = vmul.f32 %v228, %v228
    %v412 = vmul.f32 %v233, %v233
    %413 = vadd.xlane.f32.xlu0 %v397
    %v414 = vpop.xlane.xlu0 %413
    %415 = vadd.xlane.f32.xlu0 %v398
    %v416 = vpop.xlane.xlu0 %415
    %417 = vadd.xlane.f32.xlu0 %v399
    %v418 = vpop.xlane.xlu0 %417
    %419 = vadd.xlane.f32.xlu0 %v400
    %v420 = vpop.xlane.xlu0 %419
    %421 = vadd.xlane.f32.xlu0 %v401
    %v422 = vpop.xlane.xlu0 %421
    %423 = vadd.xlane.f32.xlu0 %v402
    %v424 = vpop.xlane.xlu0 %423
    %425 = vadd.xlane.f32.xlu0 %v403
    %v426 = vpop.xlane.xlu0 %425
    %427 = vadd.xlane.f32.xlu0 %v404
    %v428 = vpop.xlane.xlu0 %427
    %429 = vadd.xlane.f32.xlu0 %v405
    %v430 = vpop.xlane.xlu0 %429
    %431 = vadd.xlane.f32.xlu0 %v406
    %v432 = vpop.xlane.xlu0 %431
    %433 = vadd.xlane.f32.xlu0 %v407
    %v434 = vpop.xlane.xlu0 %433
    %435 = vadd.xlane.f32.xlu0 %v408
    %v436 = vpop.xlane.xlu0 %435
    %437 = vadd.xlane.f32.xlu0 %v409
    %v438 = vpop.xlane.xlu0 %437
    %439 = vadd.xlane.f32.xlu0 %v410
    %v440 = vpop.xlane.xlu0 %439
    %441 = vadd.xlane.f32.xlu0 %v411
    %v442 = vpop.xlane.xlu0 %441
    %443 = vadd.xlane.f32.xlu0 %v412
    %v444 = vpop.xlane.xlu0 %443
    %vm445 = vcmp.gt.f32.partialorder %v414, 0.0
    %vm446 = vcmp.gt.f32.partialorder %v416, 0.0
    %vm447 = vcmp.gt.f32.partialorder %v418, 0.0
    %vm448 = vcmp.gt.f32.partialorder %v420, 0.0
    %vm449 = vcmp.gt.f32.partialorder %v422, 0.0
    %vm450 = vcmp.gt.f32.partialorder %v424, 0.0
    %vm451 = vcmp.gt.f32.partialorder %v426, 0.0
    %vm452 = vcmp.gt.f32.partialorder %v428, 0.0
    %vm453 = vcmp.gt.f32.partialorder %v430, 0.0
    %vm454 = vcmp.gt.f32.partialorder %v432, 0.0
    %vm455 = vcmp.gt.f32.partialorder %v434, 0.0
    %vm456 = vcmp.gt.f32.partialorder %v436, 0.0
    %vm457 = vcmp.gt.f32.partialorder %v438, 0.0
    %vm458 = vcmp.gt.f32.partialorder %v440, 0.0
    %vm459 = vcmp.gt.f32.partialorder %v442, 0.0
    %vm460 = vcmp.gt.f32.partialorder %v444, 0.0
    %v461 = vrsqrt.pop %v414
    %v462 = vrsqrt.pop %v416
    %v463 = vrsqrt.pop %v418
    %v464 = vrsqrt.pop %v420
    %v465 = vrsqrt.pop %v422
    %v466 = vrsqrt.pop %v424
    %v467 = vrsqrt.pop %v426
    %v468 = vrsqrt.pop %v428
    %v469 = vrsqrt.pop %v430
    %v470 = vrsqrt.pop %v432
    %v471 = vrsqrt.pop %v434
    %v472 = vrsqrt.pop %v436
    %v473 = vrsqrt.pop %v438
    %v474 = vrsqrt.pop %v440
    %v475 = vrsqrt.pop %v442
    %v476 = vrsqrt.pop %v444
    %v477 = vsel %vm445, %v461, 0.0
    %v478 = vsel %vm446, %v462, 0.0
    %v479 = vsel %vm447, %v463, 0.0
    %v480 = vsel %vm448, %v464, 0.0
    %v481 = vsel %vm449, %v465, 0.0
    %v482 = vsel %vm450, %v466, 0.0
    %v483 = vsel %vm451, %v467, 0.0
    %v484 = vsel %vm452, %v468, 0.0
    %v485 = vsel %vm453, %v469, 0.0
    %v486 = vsel %vm454, %v470, 0.0
    %v487 = vsel %vm455, %v471, 0.0
    %v488 = vsel %vm456, %v472, 0.0
    %v489 = vsel %vm457, %v473, 0.0
    %v490 = vsel %vm458, %v474, 0.0
    %v491 = vsel %vm459, %v475, 0.0
    %v492 = vsel %vm460, %v476, 0.0
    %v493 = vmul.f32 %v158, %v477
    %v494 = vmul.f32 %v163, %v478
    %v495 = vmul.f32 %v168, %v479
    %v496 = vmul.f32 %v173, %v480
    %v497 = vmul.f32 %v178, %v481
    %v498 = vmul.f32 %v183, %v482
    %v499 = vmul.f32 %v188, %v483
    %v500 = vmul.f32 %v193, %v484
    %v501 = vmul.f32 %v198, %v485
    %v502 = vmul.f32 %v203, %v486
    %v503 = vmul.f32 %v208, %v487
    %v504 = vmul.f32 %v213, %v488
    %v505 = vmul.f32 %v218, %v489
    %v506 = vmul.f32 %v223, %v490
    %v507 = vmul.f32 %v228, %v491
    %v508 = vmul.f32 %v233, %v492
    %509 = vst [vmem:[#allocation8] sm:$0xff] %v493
    %510 = vst [vmem:[#allocation8 + $0x8] sm:$0xff] %v494
    %511 = vst [vmem:[#allocation8 + $0x10] sm:$0xff] %v495
    %512 = vst [vmem:[#allocation8 + $0x18] sm:$0xff] %v496
    %513 = vst [vmem:[#allocation8 + $0x20] sm:$0xff] %v497
    %514 = vst [vmem:[#allocation8 + $0x28] sm:$0xff] %v498
    %515 = vst [vmem:[#allocation8 + $0x30] sm:$0xff] %v499
    %516 = vst [vmem:[#allocation8 + $0x38] sm:$0xff] %v500
    %517 = vst [vmem:[#allocation8 + $0x40] sm:$0xff] %v501
    %518 = vst [vmem:[#allocation8 + $0x48] sm:$0xff] %v502
    %519 = vst [vmem:[#allocation8 + $0x50] sm:$0xff] %v503
    %520 = vst [vmem:[#allocation8 + $0x58] sm:$0xff] %v504
    %521 = vst [vmem:[#allocation8 + $0x60] sm:$0xff] %v505
    %522 = vst [vmem:[#allocation8 + $0x68] sm:$0xff] %v506
    %523 = vst [vmem:[#allocation8 + $0x70] sm:$0xff] %v507
    %524 = vst [vmem:[#allocation8 + $0x78] sm:$0xff] %v508
    %v525 = vmul.f32 %v319, %v319
    %v526 = vmul.f32 %v324, %v324
    %v527 = vmul.f32 %v329, %v329
    %v528 = vmul.f32 %v334, %v334
    %v529 = vmul.f32 %v339, %v339
    %v530 = vmul.f32 %v344, %v344
    %v531 = vmul.f32 %v349, %v349
    %v532 = vmul.f32 %v354, %v354
    %v533 = vmul.f32 %v359, %v359
    %v534 = vmul.f32 %v364, %v364
    %v535 = vmul.f32 %v369, %v369
    %v536 = vmul.f32 %v374, %v374
    %v537 = vmul.f32 %v379, %v379
    %v538 = vmul.f32 %v384, %v384
    %v539 = vmul.f32 %v389, %v389
    %v540 = vmul.f32 %v394, %v394
    %541 = vadd.xlane.f32.xlu0 %v525
    %v542 = vpop.xlane.xlu0 %541
    %543 = vadd.xlane.f32.xlu0 %v526
    %v544 = vpop.xlane.xlu0 %543
    %545 = vadd.xlane.f32.xlu0 %v527
    %v546 = vpop.xlane.xlu0 %545
    %547 = vadd.xlane.f32.xlu0 %v528
    %v548 = vpop.xlane.xlu0 %547
    %549 = vadd.xlane.f32.xlu0 %v529
    %v550 = vpop.xlane.xlu0 %549
    %551 = vadd.xlane.f32.xlu0 %v530
    %v552 = vpop.xlane.xlu0 %551
    %553 = vadd.xlane.f32.xlu0 %v531
    %v554 = vpop.xlane.xlu0 %553
    %555 = vadd.xlane.f32.xlu0 %v532
    %v556 = vpop.xlane.xlu0 %555
    %557 = vadd.xlane.f32.xlu0 %v533
    %v558 = vpop.xlane.xlu0 %557
    %559 = vadd.xlane.f32.xlu0 %v534
    %v560 = vpop.xlane.xlu0 %559
    %561 = vadd.xlane.f32.xlu0 %v535
    %v562 = vpop.xlane.xlu0 %561
    %563 = vadd.xlane.f32.xlu0 %v536
    %v564 = vpop.xlane.xlu0 %563
    %565 = vadd.xlane.f32.xlu0 %v537
    %v566 = vpop.xlane.xlu0 %565
    %567 = vadd.xlane.f32.xlu0 %v538
    %v568 = vpop.xlane.xlu0 %567
    %569 = vadd.xlane.f32.xlu0 %v539
    %v570 = vpop.xlane.xlu0 %569
    %571 = vadd.xlane.f32.xlu0 %v540
    %v572 = vpop.xlane.xlu0 %571
    %vm573 = vcmp.gt.f32.partialorder %v542, 0.0
    %vm574 = vcmp.gt.f32.partialorder %v544, 0.0
    %vm575 = vcmp.gt.f32.partialorder %v546, 0.0
    %vm576 = vcmp.gt.f32.partialorder %v548, 0.0
    %vm577 = vcmp.gt.f32.partialorder %v550, 0.0
    %vm578 = vcmp.gt.f32.partialorder %v552, 0.0
    %vm579 = vcmp.gt.f32.partialorder %v554, 0.0
    %vm580 = vcmp.gt.f32.partialorder %v556, 0.0
    %vm581 = vcmp.gt.f32.partialorder %v558, 0.0
    %vm582 = vcmp.gt.f32.partialorder %v560, 0.0
    %vm583 = vcmp.gt.f32.partialorder %v562, 0.0
    %vm584 = vcmp.gt.f32.partialorder %v564, 0.0
    %vm585 = vcmp.gt.f32.partialorder %v566, 0.0
    %vm586 = vcmp.gt.f32.partialorder %v568, 0.0
    %vm587 = vcmp.gt.f32.partialorder %v570, 0.0
    %vm588 = vcmp.gt.f32.partialorder %v572, 0.0
    %v589 = vrsqrt.pop %v542
    %v590 = vrsqrt.pop %v544
    %v591 = vrsqrt.pop %v546
    %v592 = vrsqrt.pop %v548
    %v593 = vrsqrt.pop %v550
    %v594 = vrsqrt.pop %v552
    %v595 = vrsqrt.pop %v554
    %v596 = vrsqrt.pop %v556
    %v597 = vrsqrt.pop %v558
    %v598 = vrsqrt.pop %v560
    %v599 = vrsqrt.pop %v562
    %v600 = vrsqrt.pop %v564
    %v601 = vrsqrt.pop %v566
    %v602 = vrsqrt.pop %v568
    %v603 = vrsqrt.pop %v570
    %v604 = vrsqrt.pop %v572
    %v605 = vsel %vm573, %v589, 0.0
    %v606 = vsel %vm574, %v590, 0.0
    %v607 = vsel %vm575, %v591, 0.0
    %v608 = vsel %vm576, %v592, 0.0
    %v609 = vsel %vm577, %v593, 0.0
    %v610 = vsel %vm578, %v594, 0.0
    %v611 = vsel %vm579, %v595, 0.0
    %v612 = vsel %vm580, %v596, 0.0
    %v613 = vsel %vm581, %v597, 0.0
    %v614 = vsel %vm582, %v598, 0.0
    %v615 = vsel %vm583, %v599, 0.0
    %v616 = vsel %vm584, %v600, 0.0
    %v617 = vsel %vm585, %v601, 0.0
    %v618 = vsel %vm586, %v602, 0.0
    %v619 = vsel %vm587, %v603, 0.0
    %v620 = vsel %vm588, %v604, 0.0
    %v621 = vmul.f32 %v319, %v605
    %v622 = vmul.f32 %v324, %v606
    %v623 = vmul.f32 %v329, %v607
    %v624 = vmul.f32 %v334, %v608
    %v625 = vmul.f32 %v339, %v609
    %v626 = vmul.f32 %v344, %v610
    %v627 = vmul.f32 %v349, %v611
    %v628 = vmul.f32 %v354, %v612
    %v629 = vmul.f32 %v359, %v613
    %v630 = vmul.f32 %v364, %v614
    %v631 = vmul.f32 %v369, %v615
    %v632 = vmul.f32 %v374, %v616
    %v633 = vmul.f32 %v379, %v617
    %v634 = vmul.f32 %v384, %v618
    %v635 = vmul.f32 %v389, %v619
    %v636 = vmul.f32 %v394, %v620
    %637 = vst [vmem:[#allocation9] sm:$0xff] %v621
    %638 = vst [vmem:[#allocation9 + $0x8] sm:$0xff] %v622
    %639 = vst [vmem:[#allocation9 + $0x10] sm:$0xff] %v623
    %640 = vst [vmem:[#allocation9 + $0x18] sm:$0xff] %v624
    %641 = vst [vmem:[#allocation9 + $0x20] sm:$0xff] %v625
    %642 = vst [vmem:[#allocation9 + $0x28] sm:$0xff] %v626
    %643 = vst [vmem:[#allocation9 + $0x30] sm:$0xff] %v627
    %644 = vst [vmem:[#allocation9 + $0x38] sm:$0xff] %v628
    %645 = vst [vmem:[#allocation9 + $0x40] sm:$0xff] %v629
    %646 = vst [vmem:[#allocation9 + $0x48] sm:$0xff] %v630
    %647 = vst [vmem:[#allocation9 + $0x50] sm:$0xff] %v631
    %648 = vst [vmem:[#allocation9 + $0x58] sm:$0xff] %v632
    %649 = vst [vmem:[#allocation9 + $0x60] sm:$0xff] %v633
    %650 = vst [vmem:[#allocation9 + $0x68] sm:$0xff] %v634
    %651 = vst [vmem:[#allocation9 + $0x70] sm:$0xff] %v635
    %652 = vst [vmem:[#allocation9 + $0x78] sm:$0xff] %v636
    // Predicated region
    $region26: #{tpu_custom_call.1} parent=1 // pred_check
      _
    $region27: #{tpu_custom_call.1} parent=1 // pred_check_branch
      %654 = sbr.rel (0) target = $region29
    $region28: #{tpu_custom_call.1} parent=1 // pred_region
      %s656 = ssub.s32 2048, 2048
      %657 = vsyncadd [#allocation4], %s656
      %s658 = sshll.u32 [#allocation8], 4
      %s659 = int_to_ptr.vmem [resolvable:$true] %s658
      %664 = dma.vmem_to_hbm [thread:$0]  %s659, 2048, %s3, [#allocation4], 128, 128, 8
    $region29: #{tpu_custom_call.1} parent=1 // pred_fallthru
      _
    // Predicated region
    $region30: #{tpu_custom_call.1} parent=1 // pred_check
      _
    $region31: #{tpu_custom_call.1} parent=1 // pred_check_branch
      %666 = sbr.rel (0) target = $region33
    $region32: #{tpu_custom_call.1} parent=1 // pred_region
      %s668 = ssub.s32 2048, 2048
      %669 = vsyncadd [#allocation10], %s668
      %s670 = sshll.u32 [#allocation9], 4
      %s671 = int_to_ptr.vmem [resolvable:$true] %s670
      %676 = dma.vmem_to_hbm [thread:$0]  %s671, 2048, %s4, [#allocation10], 128, 128, 8
    $region33: #{tpu_custom_call.1} parent=1 // pred_fallthru
      _
    // Predicated region
    $region34: #{tpu_custom_call.1} parent=1 // pred_check
      _
    $region35: #{tpu_custom_call.1} parent=1 // pred_check_branch
      %678 = sbr.rel (0) target = $region37
    $region36: #{tpu_custom_call.1} parent=1 // pred_region
      %679 = dma.done [#allocation4], 2048
    $region37: #{tpu_custom_call.1} parent=1 // pred_fallthru
      _
    // Predicated region
    $region38: #{tpu_custom_call.1} parent=1 // pred_check
      _
    $region39: #{tpu_custom_call.1} parent=1 // pred_check_branch
      %681 = sbr.rel (0) target = $region41
    $region40: #{tpu_custom_call.1} parent=1 // pred_region
      %682 = dma.done [#allocation10], 2048
    $region41: #{tpu_custom_call.1} parent=1 // pred_fallthru
      _
    %683 = vsyncpa [#allocation3], 1
    %684 = vsyncpa [#allocation6], 1
    %685 = vsyncpa [#allocation4], 1
    %686 = vsyncpa [#allocation10], 1

</llo_original>
